<compile_context>
chip_gen: v6e
topology: v6e:2x2x1
jax: 0.10.0
libtpu: 0.0.40
codegen_flags: <defaults>
</compile_context>

<pallas_src>
import jax
import jax.numpy as jnp
from jax.experimental import pallas as pl
from jax.experimental.pallas import tpu as pltpu


def _round_up(x, m):
    return (x + m - 1) // m * m


def _device_kind():
    try:
        return jax.devices()[0].device_kind.lower()
    except Exception:
        return ""


def _preferred_batch_tile():
    kind = _device_kind()
    if "v6" in kind or "v7" in kind:
        return 256  # 256-wide MXU: fill the M dimension, halve grid steps
    return 128      # v5e / v4 / older: 128x128 MXU


def _use_core_parallel():
    # v7x has 2 TensorCores/chip; only CORE_PARALLEL actually shards the grid across them.
    return "v7" in _device_kind()


def element_encoder_kernel(idx_ref, ew_ref, b_ref, out_ref):
    """One batch tile: out = relu(onehot(idx) @ EW + b).

    idx_ref : (BM, 1)  int32   ids for this tile
    ew_ref  : (V, Dp)  bf16    fused table  EW = emb_table @ W^T   (VMEM-resident)
    b_ref   : (1, Dp)  f32     zero-padded bias
    out_ref : (BM, Dp)         lane-dense padded output tile
    """
    ids = idx_ref[...]                                           # (BM, 1)
    BM = ids.shape[0]
    V = ew_ref.shape[0]

    # Embedding gather expressed as a one-hot matmul against the *fused* table,
    # so embedding + linear become a single MXU pass (contraction dim = V).
    iota = jax.lax.broadcasted_iota(jnp.int32, (BM, V), 1)       # (BM, V)
    onehot = (iota == ids).astype(ew_ref.dtype)                  # exact 0/1 in bf16
    h = jnp.dot(onehot, ew_ref[...], preferred_element_type=jnp.float32)   # (BM, Dp) f32
    out_ref[...] = jnp.maximum(h + b_ref[...], 0.0).astype(out_ref.dtype)


def prepare_element_encoder_params(emb_table, weight_t, bias):
    """Fold the (static) linear weight into the embedding table, once, offline.

    emb_table: (V, D_in) f32
    weight_t : (D_in, D_out) f32   -- nn.Linear.weight pre-transposed once
    bias     : (D_out,) f32
    Returns (ew_padded bf16 (V, Dp), bias_padded f32 (1, Dp), d_out), Dp = ceil(D_out/128)*128.
    """
    d_out = weight_t.shape[1]
    dp = _round_up(d_out, 128)
    ew = jnp.dot(emb_table, weight_t, preferred_element_type=jnp.float32)   # (V, D_out)
    ew = jnp.pad(ew, ((0, 0), (0, dp - d_out))).astype(jnp.bfloat16)
    b = jnp.pad(bias.astype(jnp.float32), (0, dp - d_out)).reshape(1, dp)
    return ew, b, d_out


def element_encoder(element_idx, ew_padded, bias_padded, d_out, *,
                    out_dtype=jnp.float32, slice_output=True):
    """element_idx: (B,) int ids; ew_padded: (V, Dp) bf16; bias_padded: (1, Dp) f32.

    Callers should flatten ALL ElementEncoder invocations (category + subcategory
    across the whole NAML batch) into one call — batching amortizes launch overhead
    far better than any in-kernel tweak at these sizes.
    """
    B = element_idx.shape[0]
    V, Dp = ew_padded.shape
    BM = _preferred_batch_tile()

    if B <= BM:
        # ---- Small-batch path: single block, no batch grid (overhead-bound regime).
        Bp = _round_up(max(B, 1), 16)       # 16 = bf16 sublane-packing quantum
        idx = jnp.pad(element_idx.astype(jnp.int32).reshape(B, 1), ((0, Bp - B), (0, 0)))
        out = pl.pallas_call(
            element_encoder_kernel,
            out_shape=jax.ShapeDtypeStruct((Bp, Dp), out_dtype),
        )(idx, ew_padded, bias_padded)
    else:
        # ---- Large-batch path: tile the batch over the MXU M dimension.
        Bp = _round_up(B, BM)
        idx = jnp.pad(element_idx.astype(jnp.int32).reshape(B, 1), ((0, Bp - B), (0, 0)))

        def build(table_mode, dim_sem):
            def resident_spec(shape):
                if table_mode is None:
                    return pl.BlockSpec(shape, lambda i: (0, 0))
                return pl.BlockSpec(shape, lambda i: (0, 0), pipeline_mode=table_mode)

            return pl.pallas_call(
                element_encoder_kernel,
                out_shape=jax.ShapeDtypeStruct((Bp, Dp), out_dtype),
                grid_spec=pltpu.PrefetchScalarGridSpec(
                    num_scalar_prefetch=0,
                    grid=(Bp // BM,),
                    in_specs=[
                        pl.BlockSpec((BM, 1), lambda i: (i, 0)),   # per-tile ids
                        resident_spec((V, Dp)),                    # fused table, resident
                        resident_spec((1, Dp)),                    # bias, resident
                    ],
                    out_specs=pl.BlockSpec((BM, Dp), lambda i: (i, 0)),
                ),
                compiler_params=pltpu.CompilerParams(dimension_semantics=dim_sem),
            )

        dim_sem = (pltpu.CORE_PARALLEL,) if _use_core_parallel() else ("parallel",)
        try:
            # Preferred build: single-buffered resident table/bias (constant index_map
            # means they are never re-fetched; the 2nd pipeline buffer is wasted VMEM).
            out = build(pl.Buffered(1), dim_sem)(idx, ew_padded, bias_padded)
        except Exception:
            # Conservative fallback: default double-buffering, plain parallel semantics.
            out = build(None, ("parallel",))(idx, ew_padded, bias_padded)

    if slice_output:
        return out[:B, :d_out]
    return out  # padded (Bp, Dp) lane-dense slab for fused downstream consumption


if __name__ == "__main__":
    key = jax.random.PRNGKey(0)
    k_emb, k_w, k_b, k_idx, k_idx2 = jax.random.split(key, 5)

    # Small, module-consistent shapes.
    V = 32       # vocab size of the (category) embedding
    D_in = 16    # input_dim  (== embedding dim)
    D_out = 32   # output_dim

    emb_table = jax.random.normal(k_emb, (V, D_in), dtype=jnp.float32) * 0.1
    # Linear weight kept pre-transposed as (D_in, D_out); transposed once, offline.
    weight_t = jax.random.normal(k_w, (D_in, D_out), dtype=jnp.float32) * 0.1
    bias = jax.random.normal(k_b, (D_out,), dtype=jnp.float32) * 0.1

    # One-time static-weight fusion (parameter-load time in practice).
    ew_padded, bias_padded, d_out = prepare_element_encoder_params(emb_table, weight_t, bias)

    def ref_fn(ids):
        return jnp.maximum(jnp.take(emb_table, ids, axis=0) @ weight_t + bias, 0.0)

    # 1) Small-batch path (the module's typical per-field call).
    B_small = 8
    elem_small = jax.random.randint(k_idx, (B_small,), 0, V, dtype=jnp.int32)
    out_small = jax.block_until_ready(
        element_encoder(elem_small, ew_padded, bias_padded, d_out))
    assert out_small.shape == (B_small, D_out)
    assert jnp.allclose(out_small, ref_fn(elem_small), atol=5e-3, rtol=1e-2), (
        float(jnp.max(jnp.abs(out_small - ref_fn(elem_small)))))

    # 2) Flattened large-batch path (category+subcategory over a full NAML batch):
    #    exercises the MXU-tiled grid, BM=256 on v6e/v7x / 128 on v5e.
    B_big = 512
    elem_big = jax.random.randint(k_idx2, (B_big,), 0, V, dtype=jnp.int32)
    out_big = jax.block_until_ready(
        element_encoder(elem_big, ew_padded, bias_padded, d_out))
    assert out_big.shape == (B_big, D_out)
    assert jnp.allclose(out_big, ref_fn(elem_big), atol=5e-3, rtol=1e-2), (
        float(jnp.max(jnp.abs(out_big - ref_fn(elem_big)))))

    print("KERNEL_OK")
</pallas_src>

<mosaic_0001>
module attributes {stable_mosaic.version = 11 : i64} {
  func.func @element_encoder_kernel(%arg0: memref<16x1xi32, #tpu.memory_space<vmem>>, %arg1: memref<32x128xbf16, #tpu.memory_space<vmem>>, %arg2: memref<1x128xf32, #tpu.memory_space<vmem>>, %arg3: memref<16x128xf32, #tpu.memory_space<vmem>>) attributes {dimension_semantics = [], scalar_prefetch = 0 : i64, scratch_operands = 0 : i64, tpu.core_type = #tpu.core_type<tc>} {
    %c0 = arith.constant 0 : index
    %c0_0 = arith.constant 0 : index
    %0 = vector.load %arg0[%c0, %c0_0] : memref<16x1xi32, #tpu.memory_space<vmem>>, vector<16x1xi32>
    %1 = tpu.iota {dimensions = array<i32: 1>} : vector<16x32xi32>
    %2 = vector.broadcast %0 : vector<16x1xi32> to vector<16x32xi32>
    %3 = arith.cmpi eq, %1, %2 : vector<16x32xi32>
    %4 = arith.extui %3 : vector<16x32xi1> to vector<16x32xi32>
    %5 = arith.sitofp %4 : vector<16x32xi32> to vector<16x32xf32>
    %6 = arith.truncf %5 : vector<16x32xf32> to vector<16x32xbf16>
    %c0_1 = arith.constant 0 : index
    %c0_2 = arith.constant 0 : index
    %7 = vector.load %arg1[%c0_1, %c0_2] : memref<32x128xbf16, #tpu.memory_space<vmem>>, vector<32x128xbf16>
    %cst = arith.constant dense<0.000000e+00> : vector<16x128xf32>
    %8 = tpu.matmul %6, %7, %cst {dimension_numbers = #tpu.dot_dimension_numbers<[1], [0], [0], [1], [0, 0, 1, 1], [], []>} : vector<16x32xbf16>, vector<32x128xbf16>, vector<16x128xf32> -> vector<16x128xf32>
    %c0_3 = arith.constant 0 : index
    %c0_4 = arith.constant 0 : index
    %9 = vector.load %arg2[%c0_3, %c0_4] : memref<1x128xf32, #tpu.memory_space<vmem>>, vector<1x128xf32>
    %10 = vector.broadcast %9 : vector<1x128xf32> to vector<16x128xf32>
    %11 = arith.addf %8, %10 : vector<16x128xf32>
    %cst_5 = arith.constant 0.000000e+00 : f32
    %12 = vector.broadcast %cst_5 : f32 to vector<16x128xf32>
    %13 = arith.maximumf %11, %12 : vector<16x128xf32>
    %c0_6 = arith.constant 0 : index
    %c0_7 = arith.constant 0 : index
    %14 = vector.load %arg3[%c0_6, %c0_7] : memref<16x128xf32, #tpu.memory_space<vmem>>, vector<16x128xf32>
    tpu.vector_store %arg3[%c0_6, %c0_7], %13 {strides = array<i32>} : memref<16x128xf32, #tpu.memory_space<vmem>>, vector<16x128xf32>,
    return
  }
}

</mosaic_0001>

<llo_original>
// kernel: tpu_custom_call.1
$region0: #{tpu_custom_call.1}
  #allocation0 [shape = 'u32[]', space=smem, size = 0x4, offset = 0x4, fixed_abs, tag = 'smem constant byte address 0x4 - core index']
  #allocation1 [shape = 'u32[144,128]{1,0:T(1,128)}', space=vmem, size = 0x12000, scoped, tag = 'internal scratch']
  %s0 = inlined_call_operand.vmem [shape: s32[16,1], index: 0, kind: input, shape index: {}]
  %s1 = inlined_call_operand.vmem [shape: bf16[32,128], index: 1, kind: input, shape index: {}]
  %s2 = inlined_call_operand.vmem [shape: f32[1,128], index: 2, kind: input, shape index: {}]
  %s3 = inlined_call_operand.hbm [shape: f32[16,128], index: 3, kind: output, shape index: {}]
  %s4 = sld [smem:[#allocation0]]
  $region22: #{tpu_custom_call.1} parent=0
    _
  %s6 = ssub.s32 1, %s4
  %s7 = scalar_select 0, %s6, %s4
  $region1: #{tpu_custom_call.1} parent=0
    #allocation2 [shape = 'u8[8192]{0}', space=vmem, size = 0x2000, scoped, tag = 'output window, operand 0, single buffered']
    #allocation3 [shape = 's32[1]{0}', space=sflag, size = 0x4, scoped, tag = 'scoped memory for tpu_custom_call.1']
    %8 = vsyncpa [#allocation3], 0
    // Predicated region
    $region2: #{tpu_custom_call.1} parent=1 // pred_check
      _
    $region3: #{tpu_custom_call.1} parent=1 // pred_check_branch
      %10 = sbr.rel (0) target = $region5
    $region4: #{tpu_custom_call.1} parent=1 // pred_region
      _
    $region5: #{tpu_custom_call.1} parent=1 // pred_fallthru
      _
    // Predicated region
    $region6: #{tpu_custom_call.1} parent=1 // pred_check
      _
    $region7: #{tpu_custom_call.1} parent=1 // pred_check_branch
      %12 = sbr.rel (0) target = $region9
    $region8: #{tpu_custom_call.1} parent=1 // pred_region
      _
    $region9: #{tpu_custom_call.1} parent=1 // pred_fallthru
      _
    // Predicated region
    $region10: #{tpu_custom_call.1} parent=1 // pred_check
      _
    $region11: #{tpu_custom_call.1} parent=1 // pred_check_branch
      %14 = sbr.rel (0) target = $region13
    $region12: #{tpu_custom_call.1} parent=1 // pred_region
      _
    $region13: #{tpu_custom_call.1} parent=1 // pred_fallthru
      _
    %v16 = vld [vmem:[%s0] sm:$0xff]
    %v17 = vld [vmem:[%s0 + $0x8] sm:$0xff]
    %v18 = vlaneseq
    %v19 = vand.u32 %v18, 127
    %20 = vset.pattern.permute.xlu0 0
    %21 = vperm.xlu0 %20, %v16
    %v22 = vpop.permute.xlu0 %21
    %23 = vset.pattern.permute.xlu0 0
    %24 = vperm.xlu0 %23, %v17
    %v25 = vpop.permute.xlu0 %24
    %vm26 = vcmp.eq.s32.totalorder %v19, %v22
    %vm27 = vcmp.eq.s32.totalorder %v19, %v25
    %v28 = vsel %vm26, 1, 0
    %v29 = vsel %vm27, 1, 0
    %v30 = vcvt.s32.f32 %v28
    %v31 = vcvt.s32.f32 %v29
    %v32 = vpack.c.bf16 %v31, %v30
    %v33 = vld [vmem:[%s1] sm:$0xf]
    %v34 = vld [vmem:[%s1 + $0x4] sm:$0xf]
    %v35 = vld [vmem:[%s1 + $0x8] sm:$0xf]
    %v36 = vld [vmem:[%s1 + $0xc] sm:$0xf]
    %v37 = vld [vmem:[%s2] sm:$0x1]
    %v39 = vlaneseq
    %v40 = vshrl.u32 %v39, 7
    %v41 = vsub.s32 0, %v40
    %v42 = vrot.slane %v37, %v41
    %v48 = vunpack.c.l.b16 %v33
    %v49 = vunpack.c.l.b16 %v34
    %v50 = vunpack.c.l.b16 %v35
    %v51 = vunpack.c.l.b16 %v36
    %v52 = vpack.c.b16 %v49, %v48
    %v53 = vpack.c.b16 %v51, %v50
    %vm56 = vcmask 261120
    %v58 = vsel %vm56, %v32, 0
    %60 = vmatprep.subr.bf16.mxu0 0
    %61 = vmatpush1.bf16.msra.mxu0 0
    %62 = vmatprep.subr.bf16.mxu0 0
    %63 = vmatpush1.bf16.msra.mxu0 0
    %64 = vmatprep.subr.bf16.mxu0 0
    %65 = vmatpush1.bf16.msra.mxu0 0
    %66 = vmatprep.subr.bf16.mxu0 0
    %67 = vmatpush1.bf16.msra.mxu0 0
    %68 = vmatprep.subr.bf16.mxu0 0
    %69 = vmatpush1.bf16.msra.mxu0 0
    %70 = vmatprep.subr.bf16.mxu0 0
    %71 = vmatpush1.bf16.msra.mxu0 0
    %72 = vmatprep.subr.bf16.mxu0 0
    %73 = vmatpush1.bf16.msra.mxu0 %v53
    %74 = vmatprep.subr.bf16.mxu0 0
    %75 = vmatpush1.bf16.msra.mxu0 %v52
    %76 = vmatprep.subr.bf16.mxu0 0
    %77 = vmatpush2.bf16.msra.mxu0 0
    %78 = vmatprep.subr.bf16.mxu0 0
    %79 = vmatpush2.bf16.msra.mxu0 0
    %80 = vmatprep.subr.bf16.mxu0 0
    %81 = vmatpush2.bf16.msra.mxu0 0
    %82 = vmatprep.subr.bf16.mxu0 0
    %83 = vmatpush2.bf16.msra.mxu0 0
    %84 = vmatprep.subr.bf16.mxu0 0
    %85 = vmatpush2.bf16.msra.mxu0 0
    %86 = vmatprep.subr.bf16.mxu0 0
    %87 = vmatpush2.bf16.msra.mxu0 0
    %88 = vmatprep.subr.bf16.mxu0 0
    %89 = vmatpush2.bf16.msra.mxu0 0
    %90 = vmatprep.subr.bf16.mxu0 0
    %91 = vmatpush2.bf16.msra.mxu0 0
    %92 = vmatprep.mubr.bf16.mxu0 0
    %93 = vmatmul.mubr.bf16.gmra.mxu0 %v58
    %v94 = vpop.f32.mrf.mxu0
    %v95 = vadd.f32 %v42, %v94
    %v96 = vpop.f32.mrf.mxu0
    %v97 = vpop.f32.mrf.mxu0
    %v98 = vadd.f32 %v42, %v97
    %v99 = vpop.f32.mrf.mxu0
    %100 = vdwg.mxu0
    %v101 = vmax.f32 %v95, 0.0
    %v102 = vmax.f32 %v98, 0.0
    %103 = vst [vmem:[#allocation2] sm:$0xff] %v101
    %104 = vst [vmem:[#allocation2 + $0x8] sm:$0xff] %v102
    // Predicated region
    $region14: #{tpu_custom_call.1} parent=1 // pred_check
      _
    $region15: #{tpu_custom_call.1} parent=1 // pred_check_branch
      %106 = sbr.rel (0) target = $region17
    $region16: #{tpu_custom_call.1} parent=1 // pred_region
      %s108 = ssub.s32 256, 256
      %109 = vsyncadd [#allocation3], %s108
      %s110 = sshll.u32 [#allocation2], 4
      %s111 = int_to_ptr.vmem [resolvable:$true] %s110
      %116 = dma.vmem_to_hbm [thread:$0]  %s111, 256, %s3, [#allocation3], 128, 128, 8
    $region17: #{tpu_custom_call.1} parent=1 // pred_fallthru
      _
    // Predicated region
    $region18: #{tpu_custom_call.1} parent=1 // pred_check
      _
    $region19: #{tpu_custom_call.1} parent=1 // pred_check_branch
      %118 = sbr.rel (0) target = $region21
    $region20: #{tpu_custom_call.1} parent=1 // pred_region
      %119 = dma.done [#allocation3], 256
    $region21: #{tpu_custom_call.1} parent=1 // pred_fallthru
      _
    %120 = vsyncpa [#allocation3], 1

</llo_original>
